<compile_context>
chip_gen: v5e
topology: v5e:2x2
jax: 0.10.0
libtpu: 0.0.40
codegen_flags: <defaults>
</compile_context>

<pallas_src>
import jax
import jax.numpy as jnp
from jax.experimental import pallas as pl
from jax.experimental.pallas import tpu as pltpu


def _round_up(v, m):
    return ((v + m - 1) // m) * m


_VMEM_LIMIT_BYTES = 32 * 1024 * 1024  # worst-case tiles ~15 MiB; safe on v5e/v6e/v7x


def _build_kernel(k_valid, tk, mask_k, has_bias, has_scale):
    """Kernel factory.

    Argument layout: (x_ref, w_ref, [b_ref], [s_ref], o_ref, acc_ref)
      x_ref  : (tm, tk)  input dtype (f32/bf16), cast to bf16 in-kernel
      w_ref  : (tk, tn)  bf16, pre-transposed/padded weight
      b_ref  : (1,  tn)  f32  (only when has_bias)
      s_ref  : (1,  1)   f32  SMEM 1/sigma (only when has_scale)
      o_ref  : (tm, tn)  output dtype
      acc_ref: (tm, tn)  f32 VMEM scratch, resident across the K grid axis
    """

    def kernel(x_ref, w_ref, *rest):
        idx = 0
        b_ref = None
        s_ref = None
        if has_bias:
            b_ref = rest[idx]
            idx += 1
        if has_scale:
            s_ref = rest[idx]
            idx += 1
        o_ref = rest[idx]
        acc_ref = rest[idx + 1]

        k = pl.program_id(2)

        @pl.when(k == 0)
        def _init():
            acc_ref[...] = jnp.zeros_like(acc_ref)

        x = x_ref[...]
        if mask_k:
            # K tail of the (unpadded) input is out-of-bounds garbage on the
            # last K tile; zero it so NaN/inf bits can't poison the accumulator.
            col = k * tk + jax.lax.broadcasted_iota(jnp.int32, x.shape, 1)
            x = jnp.where(col < k_valid, x, 0)

        acc_ref[...] += jnp.dot(
            x.astype(jnp.bfloat16), w_ref[...],
            preferred_element_type=jnp.float32)

        @pl.when(k == pl.num_programs(2) - 1)
        def _finalize():
            r = acc_ref[...]
            if has_scale:
                r = r * s_ref[0, 0]
            if has_bias:
                r = r + b_ref[...]
            o_ref[...] = r.astype(o_ref.dtype)

    return kernel


def _snlinear_forward(x2, w_packed, b_packed, inv_sigma, *, tm, tn, tk, k_valid):
    """x2: (M, K) any float dtype; w_packed: (K_pad, N_pad) bf16."""
    m = x2.shape[0]
    k_pad, n_pad = w_packed.shape
    nm = pl.cdiv(m, tm)
    nn = n_pad // tn
    nk = k_pad // tk
    grid = (nm, nn, nk)

    has_bias = b_packed is not None
    has_scale = inv_sigma is not None
    mask_k = (k_valid % tk) != 0
    out_dtype = x2.dtype

    kernel = _build_kernel(k_valid, tk, mask_k, has_bias, has_scale)

    in_specs = [
        pl.BlockSpec((tm, tk), lambda i, j, k: (i, k)),   # x
        pl.BlockSpec((tk, tn), lambda i, j, k: (k, j)),   # W (pre-transposed)
    ]
    args = [x2, w_packed]
    if has_bias:
        in_specs.append(pl.BlockSpec((1, tn), lambda i, j, k: (0, j)))
        args.append(b_packed)
    if has_scale:
        in_specs.append(pl.BlockSpec(memory_space=pltpu.MemorySpace.SMEM))
        args.append(inv_sigma)

    # HBM traffic including re-streaming: W is read once per M tile, x once per
    # N tile, bias once per M tile, output written once.
    x_bytes = x2.size * x2.dtype.itemsize * nn
    w_bytes = w_packed.size * 2 * nm
    b_bytes = (b_packed.size * 4 * nm) if has_bias else 0
    o_bytes = m * n_pad * jnp.dtype(out_dtype).itemsize
    flops = 2 * m * n_pad * k_pad

    return pl.pallas_call(
        kernel,
        out_shape=jax.ShapeDtypeStruct((m, n_pad), out_dtype),
        grid_spec=pltpu.PrefetchScalarGridSpec(
            num_scalar_prefetch=0,
            grid=grid,
            in_specs=in_specs,
            out_specs=pl.BlockSpec((tm, tn), lambda i, j, k: (i, j)),
            scratch_shapes=[pltpu.VMEM((tm, tn), jnp.float32)],
        ),
        compiler_params=pltpu.CompilerParams(
            dimension_semantics=("parallel", "parallel", "arbitrary"),
            vmem_limit_bytes=_VMEM_LIMIT_BYTES),
        cost_estimate=pl.CostEstimate(
            flops=flops, transcendentals=0,
            bytes_accessed=x_bytes + w_bytes + b_bytes + o_bytes),
    )(*args)


def _spectral_sigma(weight, u, n_power_iterations=1, eps=1e-12):
    """torch.nn.utils.spectral_norm forward-time power iteration on W (out, in).

    Returns (sigma, updated u).  sigma is taken as ||W v|| (identical to
    u.(W v) with u = W v / ||W v||), which saves one full matvec over W.
    """
    sigma = None
    for _ in range(n_power_iterations):
        v = weight.T @ u
        v = v / jnp.maximum(jnp.linalg.norm(v), eps)
        wv = weight @ v
        sigma = jnp.linalg.norm(wv)
        u = wv / jnp.maximum(sigma, eps)
    # Note: like torch, no eps guard on 1/sigma itself (rank-deficient W -> inf).
    return sigma, u


class SNLinearPallas:
    """JAX/Pallas equivalent of the PyTorch SNLinear module."""

    # Tile caps (bf16 MXU operands, f32 accumulator).  Worst case ~15 MiB VMEM
    # with double buffering — inside the explicit 32 MiB scoped limit on all of
    # v5e / v6e / v7x.
    _TM_MAX = 512
    _TN_MAX = 512
    _TK_MAX = 2048

    def __init__(self, in_channels, out_channels, spectral_normed=False,
                 bias=True, key=jax.random.PRNGKey(0)):
        kw, ku, kb = jax.random.split(key, 3)
        self.in_channels = in_channels
        self.out_channels = out_channels
        self.spectral_normed = spectral_normed
        self.use_bias = bias

        # torch.nn.init.normal_(weight, std=0.02); PyTorch (out, in) layout.
        self.weight = 0.02 * jax.random.normal(
            kw, (out_channels, in_channels), dtype=jnp.float32)
        if bias:
            bound = 1.0 / float(in_channels) ** 0.5
            self.bias = jax.random.uniform(
                kb, (out_channels,), minval=-bound, maxval=bound,
                dtype=jnp.float32)
        else:
            self.bias = None

        # Power-iteration vector u (as in torch.nn.utils.spectral_norm).
        u = jax.random.normal(ku, (out_channels,), dtype=jnp.float32)
        self.u = u / jnp.maximum(jnp.linalg.norm(u), 1e-12)

        # ---- static tiling derived once from the (static) layer shape ----
        self._tn = min(self._TN_MAX, _round_up(out_channels, 128))
        self._tk = min(self._TK_MAX, _round_up(in_channels, 128))
        self._n_pad = _round_up(out_channels, self._tn)
        self._k_pad = _round_up(in_channels, self._tk)

        # Pre-pack the weight ONCE: zero-padded, pre-transposed to (K_pad, N_pad)
        # and cast to bf16 so the kernel is a canonical (M,K)@(K,N) MXU matmul.
        w_pad = jnp.zeros((self._k_pad, self._n_pad), dtype=jnp.bfloat16)
        self._w_packed = w_pad.at[:in_channels, :out_channels].set(
            self.weight.T.astype(jnp.bfloat16))

        if bias:
            b_pad = jnp.zeros((1, self._n_pad), dtype=jnp.float32)
            self._b_packed = b_pad.at[0, :out_channels].set(self.bias)
        else:
            self._b_packed = None

    # -- pure functional forward: safe to wrap in jax.jit, threads u explicitly --
    def apply(self, x, u=None):
        lead = x.shape[:-1]
        k_in = x.shape[-1]
        assert k_in == self.in_channels
        x2 = x.reshape(-1, k_in)
        m = x2.shape[0]

        if self.spectral_normed:
            if u is None:
                u = self.u
            sigma, u_new = _spectral_sigma(self.weight, u)
            inv_sigma = (1.0 / sigma).reshape(1, 1).astype(jnp.float32)
        else:
            u_new = u
            inv_sigma = None

        # MXU / bf16-sublane friendly M tiling (multiples of 128); m is a static
        # shape so distinct batch buckets recompile at most a handful of times.
        tm = min(self._TM_MAX, _round_up(m, 128))
        # v7x megacore: make sure there are >=2 parallel (M,N) grid tiles when a
        # single tile would cover everything and M is big enough to split.
        if (pl.cdiv(m, tm) * (self._n_pad // self._tn)) < 2 and m >= 256:
            tm = max(128, _round_up((m + 1) // 2, 128))

        out_pad = _snlinear_forward(
            x2, self._w_packed, self._b_packed, inv_sigma,
            tm=tm, tn=self._tn, tk=self._tk, k_valid=k_in)

        out = out_pad[:, :self.out_channels].reshape(*lead, self.out_channels)
        return out, u_new

    def __call__(self, x):
        out, u_new = self.apply(x, self.u)
        if self.spectral_normed:
            # Eager power-iteration state update.
            # TODO(synk): under jax.jit use .apply() and thread `u` functionally.
            self.u = u_new
        return out


if __name__ == "__main__":
    key = jax.random.PRNGKey(0)
    k_x, k_mod = jax.random.split(key)

    B, S, Cin, Cout = 4, 8, 32, 16
    x = jax.random.normal(k_x, (B, S, Cin), dtype=jnp.float32)
    x2 = x.reshape(-1, Cin)

    # bf16-quantized operands (what the MXU sees) for the pure-JAX reference.
    x_q = x2.astype(jnp.bfloat16).astype(jnp.float32)

    # --- plain linear (bias) ---
    mod = SNLinearPallas(Cin, Cout, spectral_normed=False, key=k_mod)
    y = mod(x)
    jax.block_until_ready(y)
    w_q = mod.weight.astype(jnp.bfloat16).astype(jnp.float32)
    y_ref = (x_q @ w_q.T + mod.bias).reshape(B, S, Cout)
    assert y.shape == (B, S, Cout)
    assert jnp.allclose(y, y_ref, atol=1e-3, rtol=1e-3), "plain linear mismatch"

    # --- plain linear, no bias ---
    mod_nb = SNLinearPallas(Cin, Cout, spectral_normed=False, bias=False, key=k_mod)
    y_nb = mod_nb(x)
    jax.block_until_ready(y_nb)
    y_nb_ref = (x_q @ w_q.T).reshape(B, S, Cout)
    assert jnp.allclose(y_nb, y_nb_ref, atol=1e-3, rtol=1e-3), "no-bias mismatch"

    # --- spectral-normed variant ---
    mod_sn = SNLinearPallas(Cin, Cout, spectral_normed=True, key=k_mod)
    u0 = mod_sn.u
    y_sn = mod_sn(x)
    jax.block_until_ready(y_sn)
    sigma_ref, _ = _spectral_sigma(mod_sn.weight, u0)
    y_sn_ref = ((x_q @ w_q.T) * (1.0 / sigma_ref) + mod_sn.bias).reshape(B, S, Cout)
    assert jnp.allclose(y_sn, y_sn_ref, atol=1e-3, rtol=1e-3), "SN mismatch"

    print("KERNEL_OK")
</pallas_src>

<mosaic_0001>
module attributes {stable_mosaic.version = 11 : i64} {
  func.func @kernel(%arg0: i32, %arg1: i32, %arg2: i32, %arg3: memref<128x128xf32, #tpu.memory_space<vmem>>, %arg4: memref<128x128xbf16, #tpu.memory_space<vmem>>, %arg5: memref<1x128xf32, #tpu.memory_space<vmem>>, %arg6: memref<128x128xf32, #tpu.memory_space<vmem>>, %arg7: memref<128x128xf32, #tpu.memory_space<vmem>>) attributes {dimension_semantics = [#tpu.dimension_semantics<parallel>, #tpu.dimension_semantics<parallel>, #tpu.dimension_semantics<arbitrary>], iteration_bounds = array<i64: 1, 1, 1>, scalar_prefetch = 0 : i64, scratch_operands = 1 : i64, tpu.core_type = #tpu.core_type<tc>, window_params = [{transform_indices = @transform_0, window_bounds = array<i64: 128, 128>}, {transform_indices = @transform_1, window_bounds = array<i64: 128, 128>}, {transform_indices = @transform_2, window_bounds = array<i64: 1, 128>}, {transform_indices = @transform_3, window_bounds = array<i64: 128, 128>}]} {
    %c0_i32 = arith.constant 0 : i32
    %0 = arith.cmpi eq, %arg2, %c0_i32 : i32
    %1 = arith.extui %0 : i1 to i32
    %c0_i32_0 = arith.constant 0 : i32
    %2 = arith.cmpi ne, %1, %c0_i32_0 : i32
    scf.if %2 {
      %cst_11 = arith.constant 0.000000e+00 : f32
      %22 = vector.broadcast %cst_11 : f32 to vector<128x128xf32>
      %c0_12 = arith.constant 0 : index
      %c0_13 = arith.constant 0 : index
      %23 = vector.load %arg7[%c0_12, %c0_13] : memref<128x128xf32, #tpu.memory_space<vmem>>, vector<128x128xf32>
      tpu.vector_store %arg7[%c0_12, %c0_13], %22 {strides = array<i32>} : memref<128x128xf32, #tpu.memory_space<vmem>>, vector<128x128xf32>,
    } else {
    }
    %c0 = arith.constant 0 : index
    %c0_1 = arith.constant 0 : index
    %3 = vector.load %arg3[%c0, %c0_1] : memref<128x128xf32, #tpu.memory_space<vmem>>, vector<128x128xf32>
    %c128_i32 = arith.constant 128 : i32
    %4 = arith.muli %arg2, %c128_i32 : i32
    %5 = tpu.iota {dimensions = array<i32: 1>} : vector<128x128xi32>
    %6 = vector.broadcast %4 : i32 to vector<128x128xi32>
    %7 = arith.addi %6, %5 : vector<128x128xi32>
    %c32_i32 = arith.constant 32 : i32
    %8 = vector.broadcast %c32_i32 : i32 to vector<128x128xi32>
    %9 = arith.cmpi slt, %7, %8 : vector<128x128xi32>
    %c0_i32_2 = arith.constant 0 : i32
    %10 = arith.sitofp %c0_i32_2 : i32 to f32
    %11 = vector.broadcast %10 : f32 to vector<128x128xf32>
    %12 = arith.select %9, %3, %11 : vector<128x128xi1>, vector<128x128xf32>
    %c0_3 = arith.constant 0 : index
    %c0_4 = arith.constant 0 : index
    %13 = vector.load %arg7[%c0_3, %c0_4] : memref<128x128xf32, #tpu.memory_space<vmem>>, vector<128x128xf32>
    %14 = arith.truncf %12 : vector<128x128xf32> to vector<128x128xbf16>
    %c0_5 = arith.constant 0 : index
    %c0_6 = arith.constant 0 : index
    %15 = vector.load %arg4[%c0_5, %c0_6] : memref<128x128xbf16, #tpu.memory_space<vmem>>, vector<128x128xbf16>
    %cst = arith.constant dense<0.000000e+00> : vector<128x128xf32>
    %16 = tpu.matmul %14, %15, %cst {dimension_numbers = #tpu.dot_dimension_numbers<[1], [0], [0], [1], [0, 0, 1, 1], [], []>} : vector<128x128xbf16>, vector<128x128xbf16>, vector<128x128xf32> -> vector<128x128xf32>
    %17 = arith.addf %13, %16 : vector<128x128xf32>
    %c0_7 = arith.constant 0 : index
    %c0_8 = arith.constant 0 : index
    %18 = vector.load %arg7[%c0_7, %c0_8] : memref<128x128xf32, #tpu.memory_space<vmem>>, vector<128x128xf32>
    tpu.vector_store %arg7[%c0_7, %c0_8], %17 {strides = array<i32>} : memref<128x128xf32, #tpu.memory_space<vmem>>, vector<128x128xf32>,
    %c0_i32_9 = arith.constant 0 : i32
    %19 = arith.cmpi eq, %arg2, %c0_i32_9 : i32
    %20 = arith.extui %19 : i1 to i32
    %c0_i32_10 = arith.constant 0 : i32
    %21 = arith.cmpi ne, %20, %c0_i32_10 : i32
    scf.if %21 {
      %c0_11 = arith.constant 0 : index
      %c0_12 = arith.constant 0 : index
      %22 = vector.load %arg7[%c0_11, %c0_12] : memref<128x128xf32, #tpu.memory_space<vmem>>, vector<128x128xf32>
      %c0_13 = arith.constant 0 : index
      %c0_14 = arith.constant 0 : index
      %23 = vector.load %arg5[%c0_13, %c0_14] : memref<1x128xf32, #tpu.memory_space<vmem>>, vector<1x128xf32>
      %24 = vector.broadcast %23 : vector<1x128xf32> to vector<128x128xf32>
      %25 = arith.addf %22, %24 : vector<128x128xf32>
      %c0_15 = arith.constant 0 : index
      %c0_16 = arith.constant 0 : index
      %26 = vector.load %arg6[%c0_15, %c0_16] : memref<128x128xf32, #tpu.memory_space<vmem>>, vector<128x128xf32>
      tpu.vector_store %arg6[%c0_15, %c0_16], %25 {strides = array<i32>} : memref<128x128xf32, #tpu.memory_space<vmem>>, vector<128x128xf32>,
    } else {
    }
    return
  }
  func.func @transform_0(%arg0: i32, %arg1: i32, %arg2: i32) -> (i32, i32) {
    %c0_i32 = arith.constant 0 : i32
    return %arg0, %arg2 : i32, i32
  }
  func.func @transform_1(%arg0: i32, %arg1: i32, %arg2: i32) -> (i32, i32) {
    %c0_i32 = arith.constant 0 : i32
    return %arg2, %arg1 : i32, i32
  }
  func.func @transform_2(%arg0: i32, %arg1: i32, %arg2: i32) -> (i32, i32) {
    %c0_i32 = arith.constant 0 : i32
    %c0_i32_0 = arith.constant 0 : i32
    return %c0_i32, %arg1 : i32, i32
  }
  func.func @transform_3(%arg0: i32, %arg1: i32, %arg2: i32) -> (i32, i32) {
    %c0_i32 = arith.constant 0 : i32
    return %arg0, %arg1 : i32, i32
  }
}

</mosaic_0001>

<llo_original>
// kernel: tpu_custom_call.1
$region0: #{tpu_custom_call.1}
  #allocation0 [shape = 'u32[]', space=smem, size = 0x4, offset = 0x4, fixed_abs, tag = 'smem constant byte address 0x4 - core index']
  #allocation1 [shape = 'u32[72,128]{1,0:T(1,128)}', space=vmem, size = 0x9000, scoped, tag = 'internal scratch']
  #allocation2 [shape = 'f32[128,128]{1,0:T(8,128)}', space=vmem, size = 0x10000, scoped, tag = 'scratch operand']
  %s0 = inlined_call_operand.hbm [shape: f32[32,32], index: 0, kind: input, shape index: {}]
  %s1 = inlined_call_operand.hbm [shape: bf16[128,128], index: 1, kind: input, shape index: {}]
  %s2 = inlined_call_operand.vmem [shape: f32[1,128], index: 2, kind: input, shape index: {}]
  %s3 = inlined_call_operand.hbm [shape: f32[32,128], index: 3, kind: output, shape index: {}]
  %s4 = sld [smem:[#allocation0]]
  $region38: #{tpu_custom_call.1} parent=0
    _
  %s6 = ssub.s32 1, %s4
  %s7 = scalar_select 0, %s6, %s4
  $region1: #{tpu_custom_call.1} parent=0
    #allocation3 [shape = 'u8[65536]{0}', space=vmem, size = 0x10000, scoped, tag = 'input window, operand 0, single buffered']
    #allocation4 [shape = 's32[1]{0}', space=sflag, size = 0x4, scoped, tag = 'scoped memory for tpu_custom_call.1']
    #allocation5 [shape = 's32[1]{0}', space=sflag, size = 0x4, scoped, tag = 'scoped memory for tpu_custom_call.1']
    #allocation6 [shape = 'u8[32768]{0}', space=vmem, size = 0x8000, scoped, tag = 'input window, operand 1, single buffered']
    #allocation7 [shape = 's32[1]{0}', space=sflag, size = 0x4, scoped, tag = 'scoped memory for tpu_custom_call.1']
    #allocation8 [shape = 'u8[65536]{0}', space=vmem, size = 0x10000, scoped, tag = 'output window, operand 0, single buffered']
    %8 = vsyncpa [#allocation4], 0
    %9 = vsyncpa [#allocation7], 0
    %10 = vsyncpa [#allocation5], 0
    // Predicated region
    $region2: #{tpu_custom_call.1} parent=1 // pred_check
      _
    $region3: #{tpu_custom_call.1} parent=1 // pred_check_branch
      %12 = sbr.rel (0) target = $region5
    $region4: #{tpu_custom_call.1} parent=1 // pred_region
      %14 = vsyncadd [#allocation4], 1536
      %s15 = sshll.u32 %s0, 4
      %s16 = int_to_ptr.hbm [resolvable:$true] %s15
      %s17 = sshll.u32 [#allocation3], 4
      %s18 = int_to_ptr.vmem [resolvable:$true] %s17
      %23 = dma.hbm_to_vmem [thread:$0]  %s16, 512, %s18, [#allocation4], 128, 128, 8
    $region5: #{tpu_custom_call.1} parent=1 // pred_fallthru
      _
    // Predicated region
    $region6: #{tpu_custom_call.1} parent=1 // pred_check
      _
    $region7: #{tpu_custom_call.1} parent=1 // pred_check_branch
      %25 = sbr.rel (0) target = $region9
    $region8: #{tpu_custom_call.1} parent=1 // pred_region
      %27 = vsyncadd [#allocation7], 0
      %s28 = sshll.u32 %s1, 4
      %s29 = int_to_ptr.hbm [resolvable:$true] %s28
      %s30 = sshll.u32 [#allocation6], 4
      %s31 = int_to_ptr.vmem [resolvable:$true] %s30
      %36 = dma.hbm_to_vmem [thread:$0]  %s29, 1024, %s31, [#allocation7], 64, 64, 4
    $region9: #{tpu_custom_call.1} parent=1 // pred_fallthru
      _
    // Predicated region
    $region10: #{tpu_custom_call.1} parent=1 // pred_check
      _
    $region11: #{tpu_custom_call.1} parent=1 // pred_check_branch
      %38 = sbr.rel (0) target = $region13
    $region12: #{tpu_custom_call.1} parent=1 // pred_region
      _
    $region13: #{tpu_custom_call.1} parent=1 // pred_fallthru
      _
    // Predicated region
    $region14: #{tpu_custom_call.1} parent=1 // pred_check
      _
    $region15: #{tpu_custom_call.1} parent=1 // pred_check_branch
      %40 = sbr.rel (0) target = $region17
    $region16: #{tpu_custom_call.1} parent=1 // pred_region
      %42 = dma.done [#allocation4], 2048
    $region17: #{tpu_custom_call.1} parent=1 // pred_fallthru
      _
    // Predicated region
    $region18: #{tpu_custom_call.1} parent=1 // pred_check
      _
    $region19: #{tpu_custom_call.1} parent=1 // pred_check_branch
      %44 = sbr.rel (0) target = $region21
    $region20: #{tpu_custom_call.1} parent=1 // pred_region
      %46 = dma.done [#allocation7], 1024
    $region21: #{tpu_custom_call.1} parent=1 // pred_fallthru
      _
    %p47 = scmp.eq.s32.totalorder 0, 0
    // Predicated region
    $region22: #{tpu_custom_call.1} parent=1 // pred_check
      %p48 = pneg %p47
    $region23: #{tpu_custom_call.1} parent=1 // pred_check_branch
      %50 = sbr.rel (%p48) target = $region25
    $region24: #{tpu_custom_call.1} parent=1 // pred_region
      %51 = vst [vmem:[#allocation2] sm:$0xff] 0.0
      %52 = vst [vmem:[#allocation2 + $0x8] sm:$0xff] 0.0
      %53 = vst [vmem:[#allocation2 + $0x10] sm:$0xff] 0.0
      %54 = vst [vmem:[#allocation2 + $0x18] sm:$0xff] 0.0
      %55 = vst [vmem:[#allocation2 + $0x20] sm:$0xff] 0.0
      %56 = vst [vmem:[#allocation2 + $0x28] sm:$0xff] 0.0
      %57 = vst [vmem:[#allocation2 + $0x30] sm:$0xff] 0.0
      %58 = vst [vmem:[#allocation2 + $0x38] sm:$0xff] 0.0
      %59 = vst [vmem:[#allocation2 + $0x40] sm:$0xff] 0.0
      %60 = vst [vmem:[#allocation2 + $0x48] sm:$0xff] 0.0
      %61 = vst [vmem:[#allocation2 + $0x50] sm:$0xff] 0.0
      %62 = vst [vmem:[#allocation2 + $0x58] sm:$0xff] 0.0
      %63 = vst [vmem:[#allocation2 + $0x60] sm:$0xff] 0.0
      %64 = vst [vmem:[#allocation2 + $0x68] sm:$0xff] 0.0
      %65 = vst [vmem:[#allocation2 + $0x70] sm:$0xff] 0.0
      %66 = vst [vmem:[#allocation2 + $0x78] sm:$0xff] 0.0
    $region25: #{tpu_custom_call.1} parent=1 // pred_fallthru
      _
    %v67 = vld [vmem:[#allocation3] sm:$0xff]
    %v68 = vld [vmem:[#allocation3 + $0x8] sm:$0xff]
    %v69 = vld [vmem:[#allocation3 + $0x10] sm:$0xff]
    %v70 = vld [vmem:[#allocation3 + $0x18] sm:$0xff]
    %v71 = vld [vmem:[#allocation3 + $0x20] sm:$0xff]
    %v72 = vld [vmem:[#allocation3 + $0x28] sm:$0xff]
    %v73 = vld [vmem:[#allocation3 + $0x30] sm:$0xff]
    %v74 = vld [vmem:[#allocation3 + $0x38] sm:$0xff]
    %v75 = vld [vmem:[#allocation3 + $0x40] sm:$0xff]
    %v76 = vld [vmem:[#allocation3 + $0x48] sm:$0xff]
    %v77 = vld [vmem:[#allocation3 + $0x50] sm:$0xff]
    %v78 = vld [vmem:[#allocation3 + $0x58] sm:$0xff]
    %v79 = vld [vmem:[#allocation3 + $0x60] sm:$0xff]
    %v80 = vld [vmem:[#allocation3 + $0x68] sm:$0xff]
    %v81 = vld [vmem:[#allocation3 + $0x70] sm:$0xff]
    %v82 = vld [vmem:[#allocation3 + $0x78] sm:$0xff]
    %s83 = smul.u32 0, 128
    %v84 = vlaneseq
    %v85 = vand.u32 %v84, 127
    %v86 = vstv %s83
    %v87 = vadd.s32 %v86, %v85
    %vm88 = vcmp.lt.s32.totalorder %v87, 32
    %v89 = vsel %vm88, %v67, 0.0
    %v90 = vsel %vm88, %v68, 0.0
    %v91 = vsel %vm88, %v69, 0.0
    %v92 = vsel %vm88, %v70, 0.0
    %v93 = vsel %vm88, %v71, 0.0
    %v94 = vsel %vm88, %v72, 0.0
    %v95 = vsel %vm88, %v73, 0.0
    %v96 = vsel %vm88, %v74, 0.0
    %v97 = vsel %vm88, %v75, 0.0
    %v98 = vsel %vm88, %v76, 0.0
    %v99 = vsel %vm88, %v77, 0.0
    %v100 = vsel %vm88, %v78, 0.0
    %v101 = vsel %vm88, %v79, 0.0
    %v102 = vsel %vm88, %v80, 0.0
    %v103 = vsel %vm88, %v81, 0.0
    %v104 = vsel %vm88, %v82, 0.0
    %v105 = vld [vmem:[#allocation2] sm:$0xff]
    %v106 = vld [vmem:[#allocation2 + $0x8] sm:$0xff]
    %v107 = vld [vmem:[#allocation2 + $0x10] sm:$0xff]
    %v108 = vld [vmem:[#allocation2 + $0x18] sm:$0xff]
    %v109 = vld [vmem:[#allocation2 + $0x20] sm:$0xff]
    %v110 = vld [vmem:[#allocation2 + $0x28] sm:$0xff]
    %v111 = vld [vmem:[#allocation2 + $0x30] sm:$0xff]
    %v112 = vld [vmem:[#allocation2 + $0x38] sm:$0xff]
    %v113 = vld [vmem:[#allocation2 + $0x40] sm:$0xff]
    %v114 = vld [vmem:[#allocation2 + $0x48] sm:$0xff]
    %v115 = vld [vmem:[#allocation2 + $0x50] sm:$0xff]
    %v116 = vld [vmem:[#allocation2 + $0x58] sm:$0xff]
    %v117 = vld [vmem:[#allocation2 + $0x60] sm:$0xff]
    %v118 = vld [vmem:[#allocation2 + $0x68] sm:$0xff]
    %v119 = vld [vmem:[#allocation2 + $0x70] sm:$0xff]
    %v120 = vld [vmem:[#allocation2 + $0x78] sm:$0xff]
    %v121 = vpack.c.bf16 %v90, %v89
    %v122 = vpack.c.bf16 %v92, %v91
    %v123 = vpack.c.bf16 %v94, %v93
    %v124 = vpack.c.bf16 %v96, %v95
    %v125 = vpack.c.bf16 %v98, %v97
    %v126 = vpack.c.bf16 %v100, %v99
    %v127 = vpack.c.bf16 %v102, %v101
    %v128 = vpack.c.bf16 %v104, %v103
    %v129 = vld [vmem:[#allocation6] sm:$0xf]
    %v130 = vld [vmem:[#allocation6 + $0x4] sm:$0xf]
    %v131 = vld [vmem:[#allocation6 + $0x8] sm:$0xf]
    %v132 = vld [vmem:[#allocation6 + $0xc] sm:$0xf]
    %v133 = vld [vmem:[#allocation6 + $0x10] sm:$0xf]
    %v134 = vld [vmem:[#allocation6 + $0x14] sm:$0xf]
    %v135 = vld [vmem:[#allocation6 + $0x18] sm:$0xf]
    %v136 = vld [vmem:[#allocation6 + $0x1c] sm:$0xf]
    %v137 = vld [vmem:[#allocation6 + $0x20] sm:$0xf]
    %v138 = vld [vmem:[#allocation6 + $0x24] sm:$0xf]
    %v139 = vld [vmem:[#allocation6 + $0x28] sm:$0xf]
    %v140 = vld [vmem:[#allocation6 + $0x2c] sm:$0xf]
    %v141 = vld [vmem:[#allocation6 + $0x30] sm:$0xf]
    %v142 = vld [vmem:[#allocation6 + $0x34] sm:$0xf]
    %v143 = vld [vmem:[#allocation6 + $0x38] sm:$0xf]
    %v144 = vld [vmem:[#allocation6 + $0x3c] sm:$0xf]
    %v161 = vunpack.c.l.b16 %v129
    %v162 = vunpack.c.l.b16 %v130
    %v163 = vunpack.c.l.b16 %v131
    %v164 = vunpack.c.l.b16 %v132
    %v165 = vunpack.c.l.b16 %v133
    %v166 = vunpack.c.l.b16 %v134
    %v167 = vunpack.c.l.b16 %v135
    %v168 = vunpack.c.l.b16 %v136
    %v169 = vunpack.c.l.b16 %v137
    %v170 = vunpack.c.l.b16 %v138
    %v171 = vunpack.c.l.b16 %v139
    %v172 = vunpack.c.l.b16 %v140
    %v173 = vunpack.c.l.b16 %v141
    %v174 = vunpack.c.l.b16 %v142
    %v175 = vunpack.c.l.b16 %v143
    %v176 = vunpack.c.l.b16 %v144
    %v177 = vpack.c.b16 %v162, %v161
    %v178 = vpack.c.b16 %v164, %v163
    %v179 = vpack.c.b16 %v166, %v165
    %v180 = vpack.c.b16 %v168, %v167
    %v181 = vpack.c.b16 %v170, %v169
    %v182 = vpack.c.b16 %v172, %v171
    %v183 = vpack.c.b16 %v174, %v173
    %v184 = vpack.c.b16 %v176, %v175
    %193 = vmatpush.bf16.msra.mxu0 %v184
    %194 = vmatpush.bf16.msra.mxu0 %v183
    %195 = vmatpush.bf16.msra.mxu0 %v182
    %196 = vmatpush.bf16.msra.mxu0 %v181
    %197 = vmatpush.bf16.msra.mxu0 %v180
    %198 = vmatpush.bf16.msra.mxu0 %v179
    %199 = vmatpush.bf16.msra.mxu0 %v178
    %200 = vmatpush.bf16.msra.mxu0 %v177
    %201 = vmatmul.bf16.gmra.mxu0 %v121
    %v202 = vpop.f32.mrf.mxu0
    %v203 = vadd.f32 0.0, %v202
    %v204 = vpop.f32.mrf.mxu0
    %v205 = vadd.f32 0.0, %v204
    %206 = vmatmul.bf16.gmra.mxu0 %v122
    %v207 = vpop.f32.mrf.mxu0
    %v208 = vadd.f32 0.0, %v207
    %v209 = vpop.f32.mrf.mxu0
    %v210 = vadd.f32 0.0, %v209
    %211 = vmatmul.bf16.gmra.mxu0 %v123
    %v212 = vpop.f32.mrf.mxu0
    %v213 = vadd.f32 0.0, %v212
    %v214 = vpop.f32.mrf.mxu0
    %v215 = vadd.f32 0.0, %v214
    %216 = vmatmul.bf16.gmra.mxu0 %v124
    %v217 = vpop.f32.mrf.mxu0
    %v218 = vadd.f32 0.0, %v217
    %v219 = vpop.f32.mrf.mxu0
    %v220 = vadd.f32 0.0, %v219
    %221 = vmatmul.bf16.gmra.mxu0 %v125
    %v222 = vpop.f32.mrf.mxu0
    %v223 = vadd.f32 0.0, %v222
    %v224 = vpop.f32.mrf.mxu0
    %v225 = vadd.f32 0.0, %v224
    %226 = vmatmul.bf16.gmra.mxu0 %v126
    %v227 = vpop.f32.mrf.mxu0
    %v228 = vadd.f32 0.0, %v227
    %v229 = vpop.f32.mrf.mxu0
    %v230 = vadd.f32 0.0, %v229
    %231 = vmatmul.bf16.gmra.mxu0 %v127
    %v232 = vpop.f32.mrf.mxu0
    %v233 = vadd.f32 0.0, %v232
    %v234 = vpop.f32.mrf.mxu0
    %v235 = vadd.f32 0.0, %v234
    %236 = vmatmul.bf16.gmra.mxu0 %v128
    %v237 = vpop.f32.mrf.mxu0
    %v238 = vadd.f32 0.0, %v237
    %v239 = vpop.f32.mrf.mxu0
    %v240 = vadd.f32 0.0, %v239
    %241 = vdwg.mxu0
    %v242 = vadd.f32 %v105, %v203
    %v243 = vadd.f32 %v106, %v205
    %v244 = vadd.f32 %v107, %v208
    %v245 = vadd.f32 %v108, %v210
    %v246 = vadd.f32 %v109, %v213
    %v247 = vadd.f32 %v110, %v215
    %v248 = vadd.f32 %v111, %v218
    %v249 = vadd.f32 %v112, %v220
    %v250 = vadd.f32 %v113, %v223
    %v251 = vadd.f32 %v114, %v225
    %v252 = vadd.f32 %v115, %v228
    %v253 = vadd.f32 %v116, %v230
    %v254 = vadd.f32 %v117, %v233
    %v255 = vadd.f32 %v118, %v235
    %v256 = vadd.f32 %v119, %v238
    %v257 = vadd.f32 %v120, %v240
    %258 = vst [vmem:[#allocation2] sm:$0xff] %v242
    %259 = vst [vmem:[#allocation2 + $0x8] sm:$0xff] %v243
    %260 = vst [vmem:[#allocation2 + $0x10] sm:$0xff] %v244
    %261 = vst [vmem:[#allocation2 + $0x18] sm:$0xff] %v245
    %262 = vst [vmem:[#allocation2 + $0x20] sm:$0xff] %v246
    %263 = vst [vmem:[#allocation2 + $0x28] sm:$0xff] %v247
    %264 = vst [vmem:[#allocation2 + $0x30] sm:$0xff] %v248
    %265 = vst [vmem:[#allocation2 + $0x38] sm:$0xff] %v249
    %266 = vst [vmem:[#allocation2 + $0x40] sm:$0xff] %v250
    %267 = vst [vmem:[#allocation2 + $0x48] sm:$0xff] %v251
    %268 = vst [vmem:[#allocation2 + $0x50] sm:$0xff] %v252
    %269 = vst [vmem:[#allocation2 + $0x58] sm:$0xff] %v253
    %270 = vst [vmem:[#allocation2 + $0x60] sm:$0xff] %v254
    %271 = vst [vmem:[#allocation2 + $0x68] sm:$0xff] %v255
    %272 = vst [vmem:[#allocation2 + $0x70] sm:$0xff] %v256
    %273 = vst [vmem:[#allocation2 + $0x78] sm:$0xff] %v257
    // Predicated region
    $region26: #{tpu_custom_call.1} parent=1 // pred_check
      %p274 = pneg %p47
    $region27: #{tpu_custom_call.1} parent=1 // pred_check_branch
      %276 = sbr.rel (%p274) target = $region29
    $region28: #{tpu_custom_call.1} parent=1 // pred_region
      %v277 = vld [vmem:[#allocation2] sm:$0xff]
      %v278 = vld [vmem:[#allocation2 + $0x8] sm:$0xff]
      %v279 = vld [vmem:[#allocation2 + $0x10] sm:$0xff]
      %v280 = vld [vmem:[#allocation2 + $0x18] sm:$0xff]
      %v281 = vld [vmem:[#allocation2 + $0x20] sm:$0xff]
      %v282 = vld [vmem:[#allocation2 + $0x28] sm:$0xff]
      %v283 = vld [vmem:[#allocation2 + $0x30] sm:$0xff]
      %v284 = vld [vmem:[#allocation2 + $0x38] sm:$0xff]
      %v285 = vld [vmem:[#allocation2 + $0x40] sm:$0xff]
      %v286 = vld [vmem:[#allocation2 + $0x48] sm:$0xff]
      %v287 = vld [vmem:[#allocation2 + $0x50] sm:$0xff]
      %v288 = vld [vmem:[#allocation2 + $0x58] sm:$0xff]
      %v289 = vld [vmem:[#allocation2 + $0x60] sm:$0xff]
      %v290 = vld [vmem:[#allocation2 + $0x68] sm:$0xff]
      %v291 = vld [vmem:[#allocation2 + $0x70] sm:$0xff]
      %v292 = vld [vmem:[#allocation2 + $0x78] sm:$0xff]
      %v293 = vld [vmem:[%s2] sm:$0x1]
      %v295 = vperm.slane %v293, 0
      %v297 = vadd.f32 %v277, %v295
      %v298 = vadd.f32 %v278, %v295
      %v299 = vadd.f32 %v279, %v295
      %v300 = vadd.f32 %v280, %v295
      %v301 = vadd.f32 %v281, %v295
      %v302 = vadd.f32 %v282, %v295
      %v303 = vadd.f32 %v283, %v295
      %v304 = vadd.f32 %v284, %v295
      %v305 = vadd.f32 %v285, %v295
      %v306 = vadd.f32 %v286, %v295
      %v307 = vadd.f32 %v287, %v295
      %v308 = vadd.f32 %v288, %v295
      %v309 = vadd.f32 %v289, %v295
      %v310 = vadd.f32 %v290, %v295
      %v311 = vadd.f32 %v291, %v295
      %v312 = vadd.f32 %v292, %v295
      %313 = vst [vmem:[#allocation8] sm:$0xff] %v297
      %314 = vst [vmem:[#allocation8 + $0x8] sm:$0xff] %v298
      %315 = vst [vmem:[#allocation8 + $0x10] sm:$0xff] %v299
      %316 = vst [vmem:[#allocation8 + $0x18] sm:$0xff] %v300
      %317 = vst [vmem:[#allocation8 + $0x20] sm:$0xff] %v301
      %318 = vst [vmem:[#allocation8 + $0x28] sm:$0xff] %v302
      %319 = vst [vmem:[#allocation8 + $0x30] sm:$0xff] %v303
      %320 = vst [vmem:[#allocation8 + $0x38] sm:$0xff] %v304
      %321 = vst [vmem:[#allocation8 + $0x40] sm:$0xff] %v305
      %322 = vst [vmem:[#allocation8 + $0x48] sm:$0xff] %v306
      %323 = vst [vmem:[#allocation8 + $0x50] sm:$0xff] %v307
      %324 = vst [vmem:[#allocation8 + $0x58] sm:$0xff] %v308
      %325 = vst [vmem:[#allocation8 + $0x60] sm:$0xff] %v309
      %326 = vst [vmem:[#allocation8 + $0x68] sm:$0xff] %v310
      %327 = vst [vmem:[#allocation8 + $0x70] sm:$0xff] %v311
      %328 = vst [vmem:[#allocation8 + $0x78] sm:$0xff] %v312
    $region29: #{tpu_custom_call.1} parent=1 // pred_fallthru
      _
    // Predicated region
    $region30: #{tpu_custom_call.1} parent=1 // pred_check
      _
    $region31: #{tpu_custom_call.1} parent=1 // pred_check_branch
      %330 = sbr.rel (0) target = $region33
    $region32: #{tpu_custom_call.1} parent=1 // pred_region
      %332 = vsyncadd [#allocation5], 1536
      %s333 = sshll.u32 [#allocation8], 4
      %s334 = int_to_ptr.vmem [resolvable:$true] %s333
      %s335 = sshll.u32 %s3, 4
      %s336 = int_to_ptr.hbm [resolvable:$true] %s335
      %341 = dma.vmem_to_hbm [thread:$0]  %s334, 512, %s336, [#allocation5], 128, 128, 8
    $region33: #{tpu_custom_call.1} parent=1 // pred_fallthru
      _
    // Predicated region
    $region34: #{tpu_custom_call.1} parent=1 // pred_check
      _
    $region35: #{tpu_custom_call.1} parent=1 // pred_check_branch
      %343 = sbr.rel (0) target = $region37
    $region36: #{tpu_custom_call.1} parent=1 // pred_region
      %345 = dma.done [#allocation5], 2048
    $region37: #{tpu_custom_call.1} parent=1 // pred_fallthru
      _
    %346 = vsyncpa [#allocation4], 1
    %347 = vsyncpa [#allocation7], 1
    %348 = vsyncpa [#allocation5], 1

</llo_original>
